<compile_context>
chip_gen: v6e
topology: v6e:2x2x1
jax: 0.10.0
libtpu: 0.0.40
codegen_flags: <defaults>
</compile_context>

<pallas_src>
import jax
import jax.numpy as jnp
from jax import lax
from jax.experimental import pallas as pl
from jax.experimental.pallas import tpu as pltpu


def _round_up(x: int, m: int) -> int:
    return ((x + m - 1) // m) * m


def _choose_block_m(m_rows: int, n: int, *, itemsize: int = 4,
                    vmem_budget_bytes: int = 24 * 1024 * 1024,
                    max_block_m: int = 1024,
                    target_min_tiles: int = 2) -> int:
    """Row tile that (a) keeps double-buffered X/out tiles + resident W inside
    a conservative VMEM budget (v7x-safe) and (b) yields >= target_min_tiles
    grid steps when the batch allows it (pipelining + megacore sharding)."""
    mp = _round_up(m_rows, 8)
    if mp <= 8:
        return 8
    # 2x-buffered W + bias (constant index_map, still double-buffered by default).
    fixed = 2 * n * n * itemsize + 2 * n * itemsize
    # 2x-buffered X tile + 2x-buffered out tile, per row.
    per_row = 2 * 2 * n * itemsize
    cap = max(8, (vmem_budget_bytes - fixed) // per_row)
    bm = min(max_block_m, cap, _round_up(pl.cdiv(mp, target_min_tiles), 8))
    return max(8, (bm // 8) * 8)


def residual_block_kernel(x_ref, w_ref, b_ref, o_ref):
    # x_ref : (bm, n)  f32 input tile
    # w_ref : (n, n)   weight in PyTorch (out, in) layout (f32 or bf16); resident
    # b_ref : (1, n)   f32 bias row; resident
    # o_ref : (bm, n)  output tile
    x = x_ref[...]
    # X @ W.T with no transpose op: contract the shared "in" dim (axis 1 of both
    # operands) on the MXU, accumulating in f32.
    y = lax.dot_general(
        x.astype(w_ref.dtype), w_ref[...],
        dimension_numbers=(((1,), (1,)), ((), ())),
        preferred_element_type=jnp.float32,
    )
    y = y + b_ref[...] + x                                     # bias + residual (f32)
    o_ref[...] = jnp.maximum(y, 0.01 * y).astype(o_ref.dtype)  # LeakyReLU(0.01)


def residual_block(x, weight, bias, *, block_m=None, mxu_dtype=None):
    """Fused y = LeakyReLU(x @ weight.T + bias + x).

    x: (M, n) float32.  weight: (n, n), PyTorch (out, in) layout.  bias: (n,).
    mxu_dtype: optional matmul-operand dtype (e.g. jnp.bfloat16 on v6e/v7x);
               accumulation and the epilogue stay float32.
    """
    M, n = x.shape
    assert weight.shape == (n, n) and bias.shape == (n,)

    if mxu_dtype is None:
        mxu_dtype = x.dtype
    w = weight.astype(mxu_dtype)                 # no host-side transpose
    b2 = bias.astype(jnp.float32).reshape(1, n)

    if block_m is None:
        block_m = _choose_block_m(M, n)
    block_m = max(8, _round_up(block_m, 8))
    m_pad = _round_up(max(M, block_m), block_m)
    xp = x if m_pad == M else jnp.pad(x, ((0, m_pad - M), (0, 0)))
    grid = (m_pad // block_m,)

    itemsize = 4
    cost = pl.CostEstimate(
        flops=2 * m_pad * n * n + 4 * m_pad * n,
        transcendentals=0,
        bytes_accessed=(2 * m_pad * n + n * n + n) * itemsize,
    )

    out = pl.pallas_call(
        residual_block_kernel,
        out_shape=jax.ShapeDtypeStruct((m_pad, n), x.dtype),
        grid_spec=pltpu.PrefetchScalarGridSpec(
            num_scalar_prefetch=0,
            grid=grid,
            in_specs=[
                pl.BlockSpec((block_m, n), lambda i: (i, 0)),   # X tile
                pl.BlockSpec((n, n), lambda i: (0, 0)),         # W (resident)
                pl.BlockSpec((1, n), lambda i: (0, 0)),         # bias (resident)
            ],
            out_specs=pl.BlockSpec((block_m, n), lambda i: (i, 0)),
        ),
        compiler_params=pltpu.CompilerParams(
            dimension_semantics=("parallel",),   # rows independent -> megacore
        ),
        cost_estimate=cost,
    )(xp, w, b2)

    return out if m_pad == M else out[:M]


def _ref_forward(x, weight, bias):
    y = x @ weight.T + bias + x
    return jnp.where(y > 0, y, 0.01 * y)


if __name__ == "__main__":
    key = jax.random.PRNGKey(0)
    batch, n = 8, 32

    kx, kw, kb = jax.random.split(key, 3)
    x = jax.random.normal(kx, (batch, n), dtype=jnp.float32)
    # nn.Linear(n, n) shapes: W (n, n) in (out, in) layout, b (n,).
    bound = 1.0 / jnp.sqrt(n)
    weight = jax.random.uniform(kw, (n, n), minval=-bound, maxval=bound, dtype=jnp.float32)
    bias = jax.random.uniform(kb, (n,), minval=-bound, maxval=bound, dtype=jnp.float32)

    # Small shape matching the module (grid collapses to 1; overhead-bound, correctness only).
    out = jax.block_until_ready(residual_block(x, weight, bias))
    ref = _ref_forward(x, weight, bias)
    assert out.shape == (batch, n)
    assert jnp.allclose(out, ref, atol=1e-5, rtol=1e-5)

    # Larger, non-tile-multiple batch: exercises grid > 1, row padding and the
    # "parallel" (megacore) axis.
    M2 = 1000
    x2 = jax.random.normal(jax.random.PRNGKey(1), (M2, n), dtype=jnp.float32)
    out2 = jax.block_until_ready(residual_block(x2, weight, bias))
    ref2 = _ref_forward(x2, weight, bias)
    assert out2.shape == (M2, n)
    assert jnp.allclose(out2, ref2, atol=1e-5, rtol=1e-5)

    # bf16 MXU-operand fast path (v6e/v7x): f32 accumulate + f32 epilogue,
    # validated against the f32 reference with a relaxed tolerance.
    out_bf16 = jax.block_until_ready(
        residual_block(x2, weight, bias, mxu_dtype=jnp.bfloat16))
    assert jnp.allclose(out_bf16, ref2, atol=5e-2, rtol=5e-2)

    print("KERNEL_OK")
</pallas_src>

<mosaic_0001>
module attributes {stable_mosaic.version = 11 : i64} {
  func.func @residual_block_kernel(%arg0: i32, %arg1: memref<8x32xf32, #tpu.memory_space<vmem>>, %arg2: memref<32x32xf32, #tpu.memory_space<vmem>>, %arg3: memref<1x32xf32, #tpu.memory_space<vmem>>, %arg4: memref<8x32xf32, #tpu.memory_space<vmem>>) attributes {dimension_semantics = [#tpu.dimension_semantics<parallel>], iteration_bounds = array<i64: 1>, scalar_prefetch = 0 : i64, scratch_operands = 0 : i64, tpu.core_type = #tpu.core_type<tc>, window_params = [{transform_indices = @transform_0, window_bounds = array<i64: 8, 32>}, {pipeline_mode = #tpu.pipeline_mode<synchronous>, transform_indices = @transform_1, window_bounds = array<i64: 32, 32>}, {pipeline_mode = #tpu.pipeline_mode<synchronous>, transform_indices = @transform_2, window_bounds = array<i64: 1, 32>}, {transform_indices = @transform_3, window_bounds = array<i64: 8, 32>}]} {
    %c0 = arith.constant 0 : index
    %c0_0 = arith.constant 0 : index
    %0 = vector.load %arg1[%c0, %c0_0] : memref<8x32xf32, #tpu.memory_space<vmem>>, vector<8x32xf32>
    %c0_1 = arith.constant 0 : index
    %c0_2 = arith.constant 0 : index
    %1 = vector.load %arg2[%c0_1, %c0_2] : memref<32x32xf32, #tpu.memory_space<vmem>>, vector<32x32xf32>
    %cst = arith.constant dense<0.000000e+00> : vector<8x32xf32>
    %2 = tpu.matmul %0, %1, %cst {dimension_numbers = #tpu.dot_dimension_numbers<[1], [1], [0], [0], [0, 0, 1, 0], [], []>} : vector<8x32xf32>, vector<32x32xf32>, vector<8x32xf32> -> vector<8x32xf32>
    %c0_3 = arith.constant 0 : index
    %c0_4 = arith.constant 0 : index
    %3 = vector.load %arg3[%c0_3, %c0_4] : memref<1x32xf32, #tpu.memory_space<vmem>>, vector<1x32xf32>
    %4 = vector.broadcast %3 : vector<1x32xf32> to vector<8x32xf32>
    %5 = arith.addf %2, %4 : vector<8x32xf32>
    %6 = arith.addf %5, %0 : vector<8x32xf32>
    %cst_5 = arith.constant 0.00999999977 : f32
    %7 = vector.broadcast %cst_5 : f32 to vector<8x32xf32>
    %8 = arith.mulf %7, %6 : vector<8x32xf32>
    %9 = arith.maximumf %6, %8 : vector<8x32xf32>
    %c0_6 = arith.constant 0 : index
    %c0_7 = arith.constant 0 : index
    %10 = vector.load %arg4[%c0_6, %c0_7] : memref<8x32xf32, #tpu.memory_space<vmem>>, vector<8x32xf32>
    tpu.vector_store %arg4[%c0_6, %c0_7], %9 {strides = array<i32>} : memref<8x32xf32, #tpu.memory_space<vmem>>, vector<8x32xf32>,
    return
  }
  func.func @transform_0(%arg0: i32) -> (i32, i32) {
    %c0_i32 = arith.constant 0 : i32
    %c0_i32_0 = arith.constant 0 : i32
    return %arg0, %c0_i32 : i32, i32
  }
  func.func @transform_1(%arg0: i32) -> (i32, i32) {
    %c0_i32 = arith.constant 0 : i32
    %c0_i32_0 = arith.constant 0 : i32
    %c0_i32_1 = arith.constant 0 : i32
    return %c0_i32, %c0_i32_0 : i32, i32
  }
  func.func @transform_2(%arg0: i32) -> (i32, i32) {
    %c0_i32 = arith.constant 0 : i32
    %c0_i32_0 = arith.constant 0 : i32
    %c0_i32_1 = arith.constant 0 : i32
    return %c0_i32, %c0_i32_0 : i32, i32
  }
  func.func @transform_3(%arg0: i32) -> (i32, i32) {
    %c0_i32 = arith.constant 0 : i32
    %c0_i32_0 = arith.constant 0 : i32
    return %arg0, %c0_i32 : i32, i32
  }
}

</mosaic_0001>

<llo_original>
// kernel: tpu_custom_call.1
$region0: #{tpu_custom_call.1}
  #allocation0 [shape = 'u32[]', space=smem, size = 0x4, offset = 0x4, fixed_abs, tag = 'smem constant byte address 0x4 - core index']
  #allocation1 [shape = 'u32[144,128]{1,0:T(1,128)}', space=vmem, size = 0x12000, scoped, tag = 'internal scratch']
  %s0 = inlined_call_operand.hbm [shape: f32[8,32], index: 0, kind: input, shape index: {}]
  %s1 = inlined_call_operand.hbm [shape: f32[32,32], index: 1, kind: input, shape index: {}]
  %s2 = inlined_call_operand.vmem [shape: f32[1,32], index: 2, kind: input, shape index: {}]
  %s3 = inlined_call_operand.hbm [shape: f32[8,32], index: 3, kind: output, shape index: {}]
  %s4 = sld [smem:[#allocation0]]
  $region30: #{tpu_custom_call.1} parent=0
    _
  %s6 = ssub.s32 1, %s4
  %s7 = scalar_select 0, %s6, %s4
  $region1: #{tpu_custom_call.1} parent=0
    #allocation2 [shape = 'u8[4096]{0}', space=vmem, size = 0x1000, scoped, tag = 'input window, operand 0, single buffered']
    #allocation3 [shape = 's32[1]{0}', space=sflag, size = 0x4, scoped, tag = 'scoped memory for tpu_custom_call.1']
    #allocation4 [shape = 's32[1]{0}', space=sflag, size = 0x4, scoped, tag = 'scoped memory for tpu_custom_call.1']
    #allocation5 [shape = 'u8[16384]{0}', space=vmem, size = 0x4000, scoped, tag = 'input window, operand 1, single buffered']
    #allocation6 [shape = 's32[1]{0}', space=sflag, size = 0x4, scoped, tag = 'scoped memory for tpu_custom_call.1']
    #allocation7 [shape = 'u8[4096]{0}', space=vmem, size = 0x1000, scoped, tag = 'output window, operand 0, single buffered']
    %8 = vsyncpa [#allocation3], 0
    %9 = vsyncpa [#allocation6], 0
    %10 = vsyncpa [#allocation4], 0
    // Predicated region
    $region2: #{tpu_custom_call.1} parent=1 // pred_check
      _
    $region3: #{tpu_custom_call.1} parent=1 // pred_check_branch
      %12 = sbr.rel (0) target = $region5
    $region4: #{tpu_custom_call.1} parent=1 // pred_region
      %s14 = ssub.s32 128, 128
      %15 = vsyncadd [#allocation3], %s14
      %s17 = sshll.u32 [#allocation2], 4
      %s18 = int_to_ptr.vmem [resolvable:$true] %s17
      %20 = dma.hbm_to_vmem [thread:$0]  %s0, 128, %s18, [#allocation3]
    $region5: #{tpu_custom_call.1} parent=1 // pred_fallthru
      _
    // Predicated region
    $region6: #{tpu_custom_call.1} parent=1 // pred_check
      _
    $region7: #{tpu_custom_call.1} parent=1 // pred_check_branch
      %22 = sbr.rel (0) target = $region9
    $region8: #{tpu_custom_call.1} parent=1 // pred_region
      %s24 = ssub.s32 512, 512
      %25 = vsyncadd [#allocation6], %s24
      %s26 = sshll.u32 [#allocation5], 4
      %s27 = int_to_ptr.vmem [resolvable:$true] %s26
      %32 = dma.hbm_to_vmem [thread:$0]  %s1, 512, %s27, [#allocation6], 128, 128, 8
    $region9: #{tpu_custom_call.1} parent=1 // pred_fallthru
      _
    // Predicated region
    $region10: #{tpu_custom_call.1} parent=1 // pred_check
      _
    $region11: #{tpu_custom_call.1} parent=1 // pred_check_branch
      %34 = sbr.rel (0) target = $region13
    $region12: #{tpu_custom_call.1} parent=1 // pred_region
      _
    $region13: #{tpu_custom_call.1} parent=1 // pred_fallthru
      _
    // Predicated region
    $region14: #{tpu_custom_call.1} parent=1 // pred_check
      _
    $region15: #{tpu_custom_call.1} parent=1 // pred_check_branch
      %36 = sbr.rel (0) target = $region17
    $region16: #{tpu_custom_call.1} parent=1 // pred_region
      %37 = dma.done [#allocation3], 128
    $region17: #{tpu_custom_call.1} parent=1 // pred_fallthru
      _
    // Predicated region
    $region18: #{tpu_custom_call.1} parent=1 // pred_check
      _
    $region19: #{tpu_custom_call.1} parent=1 // pred_check_branch
      %39 = sbr.rel (0) target = $region21
    $region20: #{tpu_custom_call.1} parent=1 // pred_region
      %40 = dma.done [#allocation6], 512
    $region21: #{tpu_custom_call.1} parent=1 // pred_fallthru
      _
    %v41 = vld [vmem:[#allocation2] sm:$0xff]
    %v42 = vld [vmem:[#allocation5] sm:$0xff]
    %v43 = vld [vmem:[#allocation5 + $0x8] sm:$0xff]
    %v44 = vld [vmem:[#allocation5 + $0x10] sm:$0xff]
    %v45 = vld [vmem:[#allocation5 + $0x18] sm:$0xff]
    %v46 = vld [vmem:[%s2] sm:$0x1]
    %v48 = vlaneseq
    %v49 = vshrl.u32 %v48, 7
    %v50 = vsub.s32 0, %v49
    %v51 = vrot.slane %v46, %v50
    %vm53 = vcmask 261120
    %v55 = vsel %vm53, %v41, 0
    %v58 = vsel %vm53, %v42, 0
    %v61 = vsel %vm53, %v43, 0
    %v64 = vsel %vm53, %v44, 0
    %v67 = vsel %vm53, %v45, 0
    %69 = vmatprep.subr.mxu0 0.0
    %70 = vmatpush1.xpose.msra.mxu0 0.0
    %71 = vmatprep.subr.mxu0 0.0
    %72 = vmatpush1.xpose.msra.mxu0 0.0
    %73 = vmatprep.subr.mxu0 0.0
    %74 = vmatpush1.xpose.msra.mxu0 0.0
    %75 = vmatprep.subr.mxu0 0.0
    %76 = vmatpush1.xpose.msra.mxu0 0.0
    %77 = vmatprep.subr.mxu0 0.0
    %78 = vmatpush1.xpose.msra.mxu0 0.0
    %79 = vmatprep.subr.mxu0 0.0
    %80 = vmatpush1.xpose.msra.mxu0 0.0
    %81 = vmatprep.subr.mxu0 0.0
    %82 = vmatpush1.xpose.msra.mxu0 0.0
    %83 = vmatprep.subr.mxu0 0.0
    %84 = vmatpush1.xpose.msra.mxu0 0.0
    %85 = vmatprep.subr.mxu0 0.0
    %86 = vmatpush1.xpose.msra.mxu0 0.0
    %87 = vmatprep.subr.mxu0 0.0
    %88 = vmatpush1.xpose.msra.mxu0 0.0
    %89 = vmatprep.subr.mxu0 0.0
    %90 = vmatpush1.xpose.msra.mxu0 0.0
    %91 = vmatprep.subr.mxu0 0.0
    %92 = vmatpush1.xpose.msra.mxu0 0.0
    %93 = vmatprep.subr.mxu0 0.0
    %94 = vmatpush1.xpose.msra.mxu0 %v67
    %95 = vmatprep.subr.mxu0 0.0
    %96 = vmatpush1.xpose.msra.mxu0 %v64
    %97 = vmatprep.subr.mxu0 0.0
    %98 = vmatpush1.xpose.msra.mxu0 %v61
    %99 = vmatprep.subr.mxu0 0.0
    %100 = vmatpush1.xpose.msra.mxu0 %v58
    %101 = vmatprep.subr.mxu0 0.0
    %102 = vmatpush2.xpose.msra.mxu0 0.0
    %103 = vmatprep.subr.mxu0 0.0
    %104 = vmatpush2.xpose.msra.mxu0 0.0
    %105 = vmatprep.subr.mxu0 0.0
    %106 = vmatpush2.xpose.msra.mxu0 0.0
    %107 = vmatprep.subr.mxu0 0.0
    %108 = vmatpush2.xpose.msra.mxu0 0.0
    %109 = vmatprep.subr.mxu0 0.0
    %110 = vmatpush2.xpose.msra.mxu0 0.0
    %111 = vmatprep.subr.mxu0 0.0
    %112 = vmatpush2.xpose.msra.mxu0 0.0
    %113 = vmatprep.subr.mxu0 0.0
    %114 = vmatpush2.xpose.msra.mxu0 0.0
    %115 = vmatprep.subr.mxu0 0.0
    %116 = vmatpush2.xpose.msra.mxu0 0.0
    %117 = vmatprep.subr.mxu0 0.0
    %118 = vmatpush2.xpose.msra.mxu0 0.0
    %119 = vmatprep.subr.mxu0 0.0
    %120 = vmatpush2.xpose.msra.mxu0 0.0
    %121 = vmatprep.subr.mxu0 0.0
    %122 = vmatpush2.xpose.msra.mxu0 0.0
    %123 = vmatprep.subr.mxu0 0.0
    %124 = vmatpush2.xpose.msra.mxu0 0.0
    %125 = vmatprep.subr.mxu0 0.0
    %126 = vmatpush2.xpose.msra.mxu0 0.0
    %127 = vmatprep.subr.mxu0 0.0
    %128 = vmatpush2.xpose.msra.mxu0 0.0
    %129 = vmatprep.subr.mxu0 0.0
    %130 = vmatpush2.xpose.msra.mxu0 0.0
    %131 = vmatprep.subr.mxu0 0.0
    %132 = vmatpush2.xpose.msra.mxu0 0.0
    %133 = vmatprep.mubr.f32.mxu0 0.0
    %134 = vmatmul.mubr.f32.gmra.mxu0 %v55
    %v135 = vpop.f32.mrf.mxu0
    %v136 = vadd.f32 %v51, %v135
    %v137 = vpop.f32.mrf.mxu0
    %138 = vdwg.mxu0
    %v139 = vadd.f32 %v136, %v41
    %v140 = vmul.f32 %v139, 0.01
    %v141 = vmax.f32 %v139, %v140
    %142 = vst.msk [vmem:[#allocation7] sm:$0xff] %vm53, %v141
    // Predicated region
    $region22: #{tpu_custom_call.1} parent=1 // pred_check
      _
    $region23: #{tpu_custom_call.1} parent=1 // pred_check_branch
      %144 = sbr.rel (0) target = $region25
    $region24: #{tpu_custom_call.1} parent=1 // pred_region
      %s146 = ssub.s32 128, 128
      %147 = vsyncadd [#allocation4], %s146
      %s149 = sshll.u32 [#allocation7], 4
      %s150 = int_to_ptr.vmem [resolvable:$true] %s149
      %152 = dma.vmem_to_hbm [thread:$0]  %s150, 128, %s3, [#allocation4]
    $region25: #{tpu_custom_call.1} parent=1 // pred_fallthru
      _
    // Predicated region
    $region26: #{tpu_custom_call.1} parent=1 // pred_check
      _
    $region27: #{tpu_custom_call.1} parent=1 // pred_check_branch
      %154 = sbr.rel (0) target = $region29
    $region28: #{tpu_custom_call.1} parent=1 // pred_region
      %155 = dma.done [#allocation4], 128
    $region29: #{tpu_custom_call.1} parent=1 // pred_fallthru
      _
    %156 = vsyncpa [#allocation3], 1
    %157 = vsyncpa [#allocation6], 1
    %158 = vsyncpa [#allocation4], 1

</llo_original>
